<compile_context>
chip_gen: v7x
topology: tpu7x:2x2x1
jax: 0.10.0
libtpu: 0.0.40
codegen_flags: <defaults>
</compile_context>

<pallas_src>
import functools
import math

import jax
import jax.numpy as jnp
from jax.experimental import pallas as pl
from jax.experimental.pallas import tpu as pltpu

EPS = 1e-6


def _round_up(x, m):
    return (x + m - 1) // m * m


def _patch_embed_kernel(x_ref, w_ref, g2_ref, o_ref, *, dim_in, dim_out):
    # x_ref : (TILE, dim_in)       row-tile of patch-folded features
    # w_ref : (dim_in, dim_out_p)  gamma1-folded conv weight, zero-padded cols
    # g2_ref: (1, dim_out_p)       LayerNorm #2 weight, zero-padded (f32)
    # o_ref : (TILE, dim_out_p)
    x = x_ref[...].astype(jnp.float32)

    # --- LayerNorm #1 over the feature axis (biased variance, no bias term).
    # gamma1 is already folded into w on the host, so only normalization here.
    mu1 = jnp.mean(x, axis=-1, keepdims=True)
    xc = x - mu1
    var1 = jnp.mean(xc * xc, axis=-1, keepdims=True)
    xn = xc * jax.lax.rsqrt(var1 + EPS)

    # --- 1x1 conv == matmul over the feature dim (MXU). w_ref is already in
    # the compute dtype (bf16 when activations are bf16); accumulate in f32.
    y = jnp.dot(xn.astype(w_ref.dtype), w_ref[...],
                preferred_element_type=jnp.float32)

    # --- LayerNorm #2 over the *true* dim_out features. Padded columns of y
    # are exactly zero (zero weight columns), so only the variance needs a
    # mask; padded gamma2 columns are zero so padded output lands at 0.
    mu2 = jnp.sum(y, axis=-1, keepdims=True) * (1.0 / dim_out)
    yc = y - mu2
    dim_out_p = y.shape[-1]
    if dim_out_p != dim_out:
        col = jax.lax.broadcasted_iota(jnp.int32, (1, dim_out_p), 1)
        yc_v = jnp.where(col < dim_out, yc, 0.0)
    else:
        yc_v = yc
    var2 = jnp.sum(yc_v * yc_v, axis=-1, keepdims=True) * (1.0 / dim_out)
    o_ref[...] = (yc * jax.lax.rsqrt(var2 + EPS) * g2_ref[...]).astype(o_ref.dtype)


def _pick_row_tile(n_rows, dim_in, dim_out_p, act_itemsize, w_bytes, requested):
    """Largest MXU-friendly row tile that fits a conservative VMEM budget.

    Budget = 32 MiB: fits every generation's scoped VMEM once vmem_limit_bytes
    is raised, and leaves headroom inside v7x's 64 MiB physical VMEM.
    Constant-index operands (weight, gamma2) are conservatively counted twice
    (Pallas double-buffers every BlockSpec operand).
    """
    gran = 256 if n_rows >= 512 else 128  # MXU M granularity (v6e/v7x), else 128
    budget = 32 * 1024 * 1024

    def footprint(r):
        io = 2 * r * (dim_in + dim_out_p) * act_itemsize   # double-buffered tiles
        consts = 2 * (w_bytes + dim_out_p * 4)             # weight + gamma2
        work = r * (dim_in + dim_out_p) * 4                # f32 body intermediates
        return io + consts + work

    rt = requested if requested is not None else 1024
    rt = min(rt, _round_up(n_rows, gran))
    rt = max(gran, (rt // gran) * gran)
    while rt > gran and footprint(rt) > budget:
        rt -= gran
    # Prefer >= 2 grid steps so the v7x 2-TC megacore can shard the row axis.
    if rt >= 2 * gran and _round_up(n_rows, rt) // rt < 2:
        rt = max(gran, _round_up(-(-n_rows // 2), gran))
    return rt, footprint(rt)


def patch_embedding(x, gamma1, conv_w, gamma2, patch_size, *, row_tile=None):
    """s2vit PatchEmbedding forward.

    x      : (B, C, H, W) NCHW, like the PyTorch module.
    gamma1 : (dim_in,)  LN#1 weight, dim_in = C*p1*p2.
    conv_w : (dim_out, dim_in)  1x1 Conv2d weight with its 1x1 dims squeezed.
    gamma2 : (dim_out,) LN#2 weight.
    returns: (B, dim_out, H//p1, W//p2) NCHW.
    """
    p1, p2 = patch_size
    B, C, H, W = x.shape
    assert H % p1 == 0 and W % p2 == 0
    Hp, Wp = H // p1, W // p2
    dim_in = C * p1 * p2
    dim_out = conv_w.shape[0]
    assert conv_w.shape == (dim_out, dim_in)

    # Lane-dense output: pad dim_out to a multiple of 128 with zero weight
    # columns / zero gamma2 (no-op for common ViT widths that already are).
    dim_out_p = _round_up(dim_out, 128)

    # bf16 MXU feeds when the activations are bf16; LN statistics stay f32.
    compute_dtype = jnp.bfloat16 if x.dtype == jnp.bfloat16 else jnp.float32

    # Fold gamma1 into the conv weight: (xn * g1) @ W^T == xn @ (diag(g1) W^T).
    w = gamma1.astype(jnp.float32)[:, None] * conv_w.T.astype(jnp.float32)
    if dim_out_p != dim_out:
        w = jnp.pad(w, ((0, 0), (0, dim_out_p - dim_out)))
    w = w.astype(compute_dtype)

    g2 = gamma2.astype(jnp.float32).reshape(1, dim_out)
    if dim_out_p != dim_out:
        g2 = jnp.pad(g2, ((0, 0), (0, dim_out_p - dim_out)))

    # rearrange 'b c (h p1) (w p2) -> b (c p1 p2) h w' and flatten spatial
    # positions into rows (feature order = (c, p1, p2), matching the module).
    # TODO(synk): fold this NCHW patch rearrange (and the final transpose back
    # to NCHW) into the kernel BlockSpec / accept NHWC to kill the extra HBM
    # round trips; kept host-side so external layouts match the PyTorch module.
    xf = x.reshape(B, C, Hp, p1, Wp, p2)
    xf = jnp.transpose(xf, (0, 2, 4, 1, 3, 5)).reshape(B * Hp * Wp, dim_in)

    n_rows = B * Hp * Wp
    rt, fp = _pick_row_tile(
        n_rows, dim_in, dim_out_p,
        jnp.dtype(x.dtype).itemsize,
        w.size * jnp.dtype(compute_dtype).itemsize,
        row_tile)
    n_padded = _round_up(n_rows, rt)
    if n_padded != n_rows:
        xf = jnp.pad(xf, ((0, n_padded - n_rows), (0, 0)))  # zero rows -> zero out

    vmem_limit = int(min(64 << 20, max(fp + (4 << 20), 16 << 20)))

    kernel = functools.partial(_patch_embed_kernel, dim_in=dim_in, dim_out=dim_out)
    out = pl.pallas_call(
        kernel,
        out_shape=jax.ShapeDtypeStruct((n_padded, dim_out_p), x.dtype),
        grid_spec=pltpu.PrefetchScalarGridSpec(
            num_scalar_prefetch=0,
            grid=(n_padded // rt,),
            in_specs=[
                pl.BlockSpec((rt, dim_in), lambda i: (i, 0)),
                pl.BlockSpec((dim_in, dim_out_p), lambda i: (0, 0)),
                pl.BlockSpec((1, dim_out_p), lambda i: (0, 0)),
            ],
            out_specs=pl.BlockSpec((rt, dim_out_p), lambda i: (i, 0)),
        ),
        compiler_params=pltpu.CompilerParams(
            dimension_semantics=("parallel",),
            vmem_limit_bytes=vmem_limit,
        ),
    )(xf, w, g2)

    out = out[:n_rows, :dim_out]
    out = out.reshape(B, Hp, Wp, dim_out)
    return jnp.transpose(out, (0, 3, 1, 2))  # back to NCHW


def _reference(x, gamma1, conv_w, gamma2, patch_size):
    p1, p2 = patch_size
    B, C, H, W = x.shape
    Hp, Wp = H // p1, W // p2
    dim_in = C * p1 * p2
    xf = x.reshape(B, C, Hp, p1, Wp, p2)
    xf = jnp.transpose(xf, (0, 2, 4, 1, 3, 5)).reshape(B, Hp, Wp, dim_in)

    def ln(v, g):
        mu = jnp.mean(v, axis=-1, keepdims=True)
        var = jnp.mean((v - mu) ** 2, axis=-1, keepdims=True)
        return (v - mu) / jnp.sqrt(var + EPS) * g

    h = ln(xf.astype(jnp.float32), gamma1.astype(jnp.float32))
    h = h @ conv_w.T.astype(jnp.float32)
    h = ln(h, gamma2.astype(jnp.float32))
    return jnp.transpose(h, (0, 3, 1, 2)).astype(x.dtype)


if __name__ == "__main__":
    key = jax.random.PRNGKey(0)
    B, C, H, W = 2, 4, 16, 16
    patch_size = (2, 2)
    dim_out = 32
    dim_in = C * patch_size[0] * patch_size[1]           # 16

    k_x, k_w, k_g1, k_g2 = jax.random.split(key, 4)
    x = jax.random.normal(k_x, (B, C, H, W), dtype=jnp.float32)
    # Conv2d(dim_in, dim_out, 1, bias=False) weight, squeezed of its 1x1 dims.
    bound = 1.0 / math.sqrt(dim_in)
    conv_w = jax.random.uniform(k_w, (dim_out, dim_in), jnp.float32, -bound, bound)
    # LayerNorm weights init to ones in PyTorch; perturb deterministically so
    # the scale path is exercised.
    gamma1 = 1.0 + 0.05 * jax.random.normal(k_g1, (dim_in,), jnp.float32)
    gamma2 = 1.0 + 0.05 * jax.random.normal(k_g2, (dim_out,), jnp.float32)

    out = patch_embedding(x, gamma1, conv_w, gamma2, patch_size)
    out = jax.block_until_ready(out)

    ref = _reference(x, gamma1, conv_w, gamma2, patch_size)
    assert out.shape == (B, dim_out, H // 2, W // 2), out.shape
    assert jnp.allclose(out, ref, atol=1e-4, rtol=1e-4)
    print("KERNEL_OK")
</pallas_src>

<mosaic_0001>
module attributes {stable_mosaic.version = 11 : i64} {
  func.func @_patch_embed_kernel(%arg0: i32, %arg1: memref<128x16xf32, #tpu.memory_space<vmem>>, %arg2: memref<16x128xf32, #tpu.memory_space<vmem>>, %arg3: memref<1x128xf32, #tpu.memory_space<vmem>>, %arg4: memref<128x128xf32, #tpu.memory_space<vmem>>) attributes {dimension_semantics = [#tpu.dimension_semantics<parallel>], iteration_bounds = array<i64: 1>, scalar_prefetch = 0 : i64, scratch_operands = 0 : i64, tpu.core_type = #tpu.core_type<tc>, window_params = [{transform_indices = @transform_0, window_bounds = array<i64: 128, 16>}, {pipeline_mode = #tpu.pipeline_mode<synchronous>, transform_indices = @transform_1, window_bounds = array<i64: 16, 128>}, {pipeline_mode = #tpu.pipeline_mode<synchronous>, transform_indices = @transform_2, window_bounds = array<i64: 1, 128>}, {transform_indices = @transform_3, window_bounds = array<i64: 128, 128>}]} {
    %c0 = arith.constant 0 : index
    %c0_0 = arith.constant 0 : index
    %0 = vector.load %arg1[%c0, %c0_0] : memref<128x16xf32, #tpu.memory_space<vmem>>, vector<128x16xf32>
    %cst = arith.constant dense<0.000000e+00> : vector<128xf32>
    %1 = vector.multi_reduction <add>, %0, %cst [1] : vector<128x16xf32> to vector<128xf32>
    %2 = vector.shape_cast %1 : vector<128xf32> to vector<128x1xf32>
    %cst_1 = arith.constant 1.600000e+01 : f32
    %3 = vector.broadcast %cst_1 : f32 to vector<128x1xf32>
    %4 = arith.divf %2, %3 : vector<128x1xf32>
    %5 = vector.broadcast %4 : vector<128x1xf32> to vector<128x16xf32>
    %6 = arith.subf %0, %5 : vector<128x16xf32>
    %7 = arith.mulf %6, %6 : vector<128x16xf32>
    %cst_2 = arith.constant dense<0.000000e+00> : vector<128xf32>
    %8 = vector.multi_reduction <add>, %7, %cst_2 [1] : vector<128x16xf32> to vector<128xf32>
    %9 = vector.shape_cast %8 : vector<128xf32> to vector<128x1xf32>
    %cst_3 = arith.constant 1.600000e+01 : f32
    %10 = vector.broadcast %cst_3 : f32 to vector<128x1xf32>
    %11 = arith.divf %9, %10 : vector<128x1xf32>
    %cst_4 = arith.constant 9.99999997E-7 : f32
    %12 = vector.broadcast %cst_4 : f32 to vector<128x1xf32>
    %13 = arith.addf %11, %12 : vector<128x1xf32>
    %14 = math.rsqrt %13 : vector<128x1xf32>
    %15 = vector.broadcast %14 : vector<128x1xf32> to vector<128x16xf32>
    %16 = arith.mulf %6, %15 : vector<128x16xf32>
    %c0_5 = arith.constant 0 : index
    %c0_6 = arith.constant 0 : index
    %17 = vector.load %arg2[%c0_5, %c0_6] : memref<16x128xf32, #tpu.memory_space<vmem>>, vector<16x128xf32>
    %cst_7 = arith.constant dense<0.000000e+00> : vector<128x128xf32>
    %18 = tpu.matmul %16, %17, %cst_7 {dimension_numbers = #tpu.dot_dimension_numbers<[1], [0], [0], [1], [0, 0, 1, 1], [], []>} : vector<128x16xf32>, vector<16x128xf32>, vector<128x128xf32> -> vector<128x128xf32>
    %cst_8 = arith.constant dense<0.000000e+00> : vector<128xf32>
    %19 = vector.multi_reduction <add>, %18, %cst_8 [1] : vector<128x128xf32> to vector<128xf32>
    %20 = vector.shape_cast %19 : vector<128xf32> to vector<128x1xf32>
    %cst_9 = arith.constant 3.125000e-02 : f32
    %21 = vector.broadcast %cst_9 : f32 to vector<128x1xf32>
    %22 = arith.mulf %20, %21 : vector<128x1xf32>
    %23 = vector.broadcast %22 : vector<128x1xf32> to vector<128x128xf32>
    %24 = arith.subf %18, %23 : vector<128x128xf32>
    %25 = tpu.iota {dimensions = array<i32: 1>} : vector<1x128xi32>
    %c32_i32 = arith.constant 32 : i32
    %26 = vector.broadcast %c32_i32 : i32 to vector<1x128xi32>
    %27 = arith.cmpi slt, %25, %26 : vector<1x128xi32>
    %cst_10 = arith.constant 0.000000e+00 : f32
    %28 = vector.shape_cast %27 : vector<1x128xi1> to vector<1x128xi1>
    %29 = vector.broadcast %28 : vector<1x128xi1> to vector<128x128xi1>
    %30 = vector.broadcast %cst_10 : f32 to vector<128x128xf32>
    %31 = arith.select %29, %24, %30 : vector<128x128xi1>, vector<128x128xf32>
    %32 = arith.mulf %31, %31 : vector<128x128xf32>
    %cst_11 = arith.constant dense<0.000000e+00> : vector<128xf32>
    %33 = vector.multi_reduction <add>, %32, %cst_11 [1] : vector<128x128xf32> to vector<128xf32>
    %34 = vector.shape_cast %33 : vector<128xf32> to vector<128x1xf32>
    %cst_12 = arith.constant 3.125000e-02 : f32
    %35 = vector.broadcast %cst_12 : f32 to vector<128x1xf32>
    %36 = arith.mulf %34, %35 : vector<128x1xf32>
    %cst_13 = arith.constant 9.99999997E-7 : f32
    %37 = vector.broadcast %cst_13 : f32 to vector<128x1xf32>
    %38 = arith.addf %36, %37 : vector<128x1xf32>
    %39 = math.rsqrt %38 : vector<128x1xf32>
    %40 = vector.broadcast %39 : vector<128x1xf32> to vector<128x128xf32>
    %41 = arith.mulf %24, %40 : vector<128x128xf32>
    %c0_14 = arith.constant 0 : index
    %c0_15 = arith.constant 0 : index
    %42 = vector.load %arg3[%c0_14, %c0_15] : memref<1x128xf32, #tpu.memory_space<vmem>>, vector<1x128xf32>
    %43 = vector.broadcast %42 : vector<1x128xf32> to vector<128x128xf32>
    %44 = arith.mulf %41, %43 : vector<128x128xf32>
    %c0_16 = arith.constant 0 : index
    %c0_17 = arith.constant 0 : index
    %45 = vector.load %arg4[%c0_16, %c0_17] : memref<128x128xf32, #tpu.memory_space<vmem>>, vector<128x128xf32>
    tpu.vector_store %arg4[%c0_16, %c0_17], %44 {strides = array<i32>} : memref<128x128xf32, #tpu.memory_space<vmem>>, vector<128x128xf32>,
    return
  }
  func.func @transform_0(%arg0: i32) -> (i32, i32) {
    %c0_i32 = arith.constant 0 : i32
    %c0_i32_0 = arith.constant 0 : i32
    return %arg0, %c0_i32 : i32, i32
  }
  func.func @transform_1(%arg0: i32) -> (i32, i32) {
    %c0_i32 = arith.constant 0 : i32
    %c0_i32_0 = arith.constant 0 : i32
    %c0_i32_1 = arith.constant 0 : i32
    return %c0_i32, %c0_i32_0 : i32, i32
  }
  func.func @transform_2(%arg0: i32) -> (i32, i32) {
    %c0_i32 = arith.constant 0 : i32
    %c0_i32_0 = arith.constant 0 : i32
    %c0_i32_1 = arith.constant 0 : i32
    return %c0_i32, %c0_i32_0 : i32, i32
  }
  func.func @transform_3(%arg0: i32) -> (i32, i32) {
    %c0_i32 = arith.constant 0 : i32
    %c0_i32_0 = arith.constant 0 : i32
    return %arg0, %c0_i32 : i32, i32
  }
}

</mosaic_0001>

<llo_original>
// kernel: tpu_custom_call.1
$region0: #{tpu_custom_call.1}
  #allocation0 [shape = 'u32[]', space=smem, size = 0x4, offset = 0x4, fixed_abs, tag = 'smem constant byte address 0x4 - core index']
  #allocation1 [shape = 'u32[144,128]{1,0:T(1,128)}', space=vmem, size = 0x12000, scoped, tag = 'internal scratch']
  %s0 = inlined_call_operand.vmem [shape: f32[128,16], index: 0, kind: input, shape index: {}]
  %s1 = inlined_call_operand.vmem [shape: f32[16,128], index: 1, kind: input, shape index: {}]
  %s2 = inlined_call_operand.vmem [shape: f32[1,128], index: 2, kind: input, shape index: {}]
  %s3 = inlined_call_operand.hbm [shape: f32[128,128], index: 3, kind: output, shape index: {}]
  %s4 = sld [smem:[#allocation0]]
  $region22: #{tpu_custom_call.1} parent=0
    _
  %s6 = ssub.s32 1, %s4
  %s7 = scalar_select 0, %s6, %s4
  $region1: #{tpu_custom_call.1} parent=0
    #allocation2 [shape = 'u8[65536]{0}', space=vmem, size = 0x10000, scoped, tag = 'output window, operand 0, single buffered']
    #allocation3 [shape = 's32[1]{0}', space=sflag, size = 0x4, scoped, tag = 'scoped memory for tpu_custom_call.1']
    %8 = vsyncpa [#allocation3], 0
    // Predicated region
    $region2: #{tpu_custom_call.1} parent=1 // pred_check
      _
    $region3: #{tpu_custom_call.1} parent=1 // pred_check_branch
      %10 = sbr.rel (0) target = $region5
    $region4: #{tpu_custom_call.1} parent=1 // pred_region
      _
    $region5: #{tpu_custom_call.1} parent=1 // pred_fallthru
      _
    // Predicated region
    $region6: #{tpu_custom_call.1} parent=1 // pred_check
      _
    $region7: #{tpu_custom_call.1} parent=1 // pred_check_branch
      %12 = sbr.rel (0) target = $region9
    $region8: #{tpu_custom_call.1} parent=1 // pred_region
      _
    $region9: #{tpu_custom_call.1} parent=1 // pred_fallthru
      _
    // Predicated region
    $region10: #{tpu_custom_call.1} parent=1 // pred_check
      _
    $region11: #{tpu_custom_call.1} parent=1 // pred_check_branch
      %14 = sbr.rel (0) target = $region13
    $region12: #{tpu_custom_call.1} parent=1 // pred_region
      _
    $region13: #{tpu_custom_call.1} parent=1 // pred_fallthru
      _
    %v15 = vld [vmem:[%s0] sm:$0xff]
    %v16 = vld [vmem:[%s0 + $0x8] sm:$0xff]
    %v17 = vld [vmem:[%s0 + $0x10] sm:$0xff]
    %v18 = vld [vmem:[%s0 + $0x18] sm:$0xff]
    %v19 = vld [vmem:[%s0 + $0x20] sm:$0xff]
    %v20 = vld [vmem:[%s0 + $0x28] sm:$0xff]
    %v21 = vld [vmem:[%s0 + $0x30] sm:$0xff]
    %v22 = vld [vmem:[%s0 + $0x38] sm:$0xff]
    %v23 = vld [vmem:[%s0 + $0x40] sm:$0xff]
    %v24 = vld [vmem:[%s0 + $0x48] sm:$0xff]
    %v25 = vld [vmem:[%s0 + $0x50] sm:$0xff]
    %v26 = vld [vmem:[%s0 + $0x58] sm:$0xff]
    %v27 = vld [vmem:[%s0 + $0x60] sm:$0xff]
    %v28 = vld [vmem:[%s0 + $0x68] sm:$0xff]
    %v29 = vld [vmem:[%s0 + $0x70] sm:$0xff]
    %v30 = vld [vmem:[%s0 + $0x78] sm:$0xff]
    %vm31 = vcmask 130048
    %v32 = vsel %vm31, %v15, 0.0
    %33 = vadd.xlane.f32.xlu0 %v32
    %v34 = vpop.xlane.xlu0 %33
    %v35 = vsel %vm31, %v16, 0.0
    %36 = vadd.xlane.f32.xlu0 %v35
    %v37 = vpop.xlane.xlu0 %36
    %v38 = vsel %vm31, %v17, 0.0
    %39 = vadd.xlane.f32.xlu0 %v38
    %v40 = vpop.xlane.xlu0 %39
    %v41 = vsel %vm31, %v18, 0.0
    %42 = vadd.xlane.f32.xlu0 %v41
    %v43 = vpop.xlane.xlu0 %42
    %v44 = vsel %vm31, %v19, 0.0
    %45 = vadd.xlane.f32.xlu0 %v44
    %v46 = vpop.xlane.xlu0 %45
    %v47 = vsel %vm31, %v20, 0.0
    %48 = vadd.xlane.f32.xlu0 %v47
    %v49 = vpop.xlane.xlu0 %48
    %v50 = vsel %vm31, %v21, 0.0
    %51 = vadd.xlane.f32.xlu0 %v50
    %v52 = vpop.xlane.xlu0 %51
    %v53 = vsel %vm31, %v22, 0.0
    %54 = vadd.xlane.f32.xlu0 %v53
    %v55 = vpop.xlane.xlu0 %54
    %v56 = vsel %vm31, %v23, 0.0
    %57 = vadd.xlane.f32.xlu0 %v56
    %v58 = vpop.xlane.xlu0 %57
    %v59 = vsel %vm31, %v24, 0.0
    %60 = vadd.xlane.f32.xlu0 %v59
    %v61 = vpop.xlane.xlu0 %60
    %v62 = vsel %vm31, %v25, 0.0
    %63 = vadd.xlane.f32.xlu0 %v62
    %v64 = vpop.xlane.xlu0 %63
    %v65 = vsel %vm31, %v26, 0.0
    %66 = vadd.xlane.f32.xlu0 %v65
    %v67 = vpop.xlane.xlu0 %66
    %v68 = vsel %vm31, %v27, 0.0
    %69 = vadd.xlane.f32.xlu0 %v68
    %v70 = vpop.xlane.xlu0 %69
    %v71 = vsel %vm31, %v28, 0.0
    %72 = vadd.xlane.f32.xlu0 %v71
    %v73 = vpop.xlane.xlu0 %72
    %v74 = vsel %vm31, %v29, 0.0
    %75 = vadd.xlane.f32.xlu0 %v74
    %v76 = vpop.xlane.xlu0 %75
    %v77 = vsel %vm31, %v30, 0.0
    %78 = vadd.xlane.f32.xlu0 %v77
    %v79 = vpop.xlane.xlu0 %78
    %v80 = vrcp.pop 16.0
    %v81 = vmul.f32 %v34, %v80
    %v82 = vmul.f32 %v37, %v80
    %v83 = vmul.f32 %v40, %v80
    %v84 = vmul.f32 %v43, %v80
    %v85 = vmul.f32 %v46, %v80
    %v86 = vmul.f32 %v49, %v80
    %v87 = vmul.f32 %v52, %v80
    %v88 = vmul.f32 %v55, %v80
    %v89 = vmul.f32 %v58, %v80
    %v90 = vmul.f32 %v61, %v80
    %v91 = vmul.f32 %v64, %v80
    %v92 = vmul.f32 %v67, %v80
    %v93 = vmul.f32 %v70, %v80
    %v94 = vmul.f32 %v73, %v80
    %v95 = vmul.f32 %v76, %v80
    %v96 = vmul.f32 %v79, %v80
    %v97 = vsub.f32 %v15, %v81
    %v98 = vsub.f32 %v16, %v82
    %v99 = vsub.f32 %v17, %v83
    %v100 = vsub.f32 %v18, %v84
    %v101 = vsub.f32 %v19, %v85
    %v102 = vsub.f32 %v20, %v86
    %v103 = vsub.f32 %v21, %v87
    %v104 = vsub.f32 %v22, %v88
    %v105 = vsub.f32 %v23, %v89
    %v106 = vsub.f32 %v24, %v90
    %v107 = vsub.f32 %v25, %v91
    %v108 = vsub.f32 %v26, %v92
    %v109 = vsub.f32 %v27, %v93
    %v110 = vsub.f32 %v28, %v94
    %v111 = vsub.f32 %v29, %v95
    %v112 = vsub.f32 %v30, %v96
    %v113 = vmul.f32 %v97, %v97
    %v114 = vmul.f32 %v98, %v98
    %v115 = vmul.f32 %v99, %v99
    %v116 = vmul.f32 %v100, %v100
    %v117 = vmul.f32 %v101, %v101
    %v118 = vmul.f32 %v102, %v102
    %v119 = vmul.f32 %v103, %v103
    %v120 = vmul.f32 %v104, %v104
    %v121 = vmul.f32 %v105, %v105
    %v122 = vmul.f32 %v106, %v106
    %v123 = vmul.f32 %v107, %v107
    %v124 = vmul.f32 %v108, %v108
    %v125 = vmul.f32 %v109, %v109
    %v126 = vmul.f32 %v110, %v110
    %v127 = vmul.f32 %v111, %v111
    %v128 = vmul.f32 %v112, %v112
    %v129 = vsel %vm31, %v113, 0.0
    %130 = vadd.xlane.f32.xlu0 %v129
    %v131 = vpop.xlane.xlu0 %130
    %v132 = vsel %vm31, %v114, 0.0
    %133 = vadd.xlane.f32.xlu0 %v132
    %v134 = vpop.xlane.xlu0 %133
    %v135 = vsel %vm31, %v115, 0.0
    %136 = vadd.xlane.f32.xlu0 %v135
    %v137 = vpop.xlane.xlu0 %136
    %v138 = vsel %vm31, %v116, 0.0
    %139 = vadd.xlane.f32.xlu0 %v138
    %v140 = vpop.xlane.xlu0 %139
    %v141 = vsel %vm31, %v117, 0.0
    %142 = vadd.xlane.f32.xlu0 %v141
    %v143 = vpop.xlane.xlu0 %142
    %v144 = vsel %vm31, %v118, 0.0
    %145 = vadd.xlane.f32.xlu0 %v144
    %v146 = vpop.xlane.xlu0 %145
    %v147 = vsel %vm31, %v119, 0.0
    %148 = vadd.xlane.f32.xlu0 %v147
    %v149 = vpop.xlane.xlu0 %148
    %v150 = vsel %vm31, %v120, 0.0
    %151 = vadd.xlane.f32.xlu0 %v150
    %v152 = vpop.xlane.xlu0 %151
    %v153 = vsel %vm31, %v121, 0.0
    %154 = vadd.xlane.f32.xlu0 %v153
    %v155 = vpop.xlane.xlu0 %154
    %v156 = vsel %vm31, %v122, 0.0
    %157 = vadd.xlane.f32.xlu0 %v156
    %v158 = vpop.xlane.xlu0 %157
    %v159 = vsel %vm31, %v123, 0.0
    %160 = vadd.xlane.f32.xlu0 %v159
    %v161 = vpop.xlane.xlu0 %160
    %v162 = vsel %vm31, %v124, 0.0
    %163 = vadd.xlane.f32.xlu0 %v162
    %v164 = vpop.xlane.xlu0 %163
    %v165 = vsel %vm31, %v125, 0.0
    %166 = vadd.xlane.f32.xlu0 %v165
    %v167 = vpop.xlane.xlu0 %166
    %v168 = vsel %vm31, %v126, 0.0
    %169 = vadd.xlane.f32.xlu0 %v168
    %v170 = vpop.xlane.xlu0 %169
    %v171 = vsel %vm31, %v127, 0.0
    %172 = vadd.xlane.f32.xlu0 %v171
    %v173 = vpop.xlane.xlu0 %172
    %v174 = vsel %vm31, %v128, 0.0
    %175 = vadd.xlane.f32.xlu0 %v174
    %v176 = vpop.xlane.xlu0 %175
    %v177 = vmul.f32 %v131, %v80
    %v178 = vmul.f32 %v134, %v80
    %v179 = vmul.f32 %v137, %v80
    %v180 = vmul.f32 %v140, %v80
    %v181 = vmul.f32 %v143, %v80
    %v182 = vmul.f32 %v146, %v80
    %v183 = vmul.f32 %v149, %v80
    %v184 = vmul.f32 %v152, %v80
    %v185 = vmul.f32 %v155, %v80
    %v186 = vmul.f32 %v158, %v80
    %v187 = vmul.f32 %v161, %v80
    %v188 = vmul.f32 %v164, %v80
    %v189 = vmul.f32 %v167, %v80
    %v190 = vmul.f32 %v170, %v80
    %v191 = vmul.f32 %v173, %v80
    %v192 = vmul.f32 %v176, %v80
    %v193 = vadd.f32 %v177, 1e-06
    %v194 = vadd.f32 %v178, 1e-06
    %v195 = vadd.f32 %v179, 1e-06
    %v196 = vadd.f32 %v180, 1e-06
    %v197 = vadd.f32 %v181, 1e-06
    %v198 = vadd.f32 %v182, 1e-06
    %v199 = vadd.f32 %v183, 1e-06
    %v200 = vadd.f32 %v184, 1e-06
    %v201 = vadd.f32 %v185, 1e-06
    %v202 = vadd.f32 %v186, 1e-06
    %v203 = vadd.f32 %v187, 1e-06
    %v204 = vadd.f32 %v188, 1e-06
    %v205 = vadd.f32 %v189, 1e-06
    %v206 = vadd.f32 %v190, 1e-06
    %v207 = vadd.f32 %v191, 1e-06
    %v208 = vadd.f32 %v192, 1e-06
    %v209 = vrsqrt.pop %v193
    %v210 = vrsqrt.pop %v194
    %v211 = vrsqrt.pop %v195
    %v212 = vrsqrt.pop %v196
    %v213 = vrsqrt.pop %v197
    %v214 = vrsqrt.pop %v198
    %v215 = vrsqrt.pop %v199
    %v216 = vrsqrt.pop %v200
    %v217 = vrsqrt.pop %v201
    %v218 = vrsqrt.pop %v202
    %v219 = vrsqrt.pop %v203
    %v220 = vrsqrt.pop %v204
    %v221 = vrsqrt.pop %v205
    %v222 = vrsqrt.pop %v206
    %v223 = vrsqrt.pop %v207
    %v224 = vrsqrt.pop %v208
    %v225 = vmul.f32 %v97, %v209
    %v226 = vmul.f32 %v98, %v210
    %v227 = vmul.f32 %v99, %v211
    %v228 = vmul.f32 %v100, %v212
    %v229 = vmul.f32 %v101, %v213
    %v230 = vmul.f32 %v102, %v214
    %v231 = vmul.f32 %v103, %v215
    %v232 = vmul.f32 %v104, %v216
    %v233 = vmul.f32 %v105, %v217
    %v234 = vmul.f32 %v106, %v218
    %v235 = vmul.f32 %v107, %v219
    %v236 = vmul.f32 %v108, %v220
    %v237 = vmul.f32 %v109, %v221
    %v238 = vmul.f32 %v110, %v222
    %v239 = vmul.f32 %v111, %v223
    %v240 = vmul.f32 %v112, %v224
    %v241 = vld [vmem:[%s1] sm:$0xff]
    %v242 = vld [vmem:[%s1 + $0x8] sm:$0xff]
    %v244 = vsel %vm31, %v225, 0
    %v247 = vsel %vm31, %v226, 0
    %v250 = vsel %vm31, %v227, 0
    %v253 = vsel %vm31, %v228, 0
    %v256 = vsel %vm31, %v229, 0
    %v259 = vsel %vm31, %v230, 0
    %v262 = vsel %vm31, %v231, 0
    %v265 = vsel %vm31, %v232, 0
    %v268 = vsel %vm31, %v233, 0
    %v271 = vsel %vm31, %v234, 0
    %v274 = vsel %vm31, %v235, 0
    %v277 = vsel %vm31, %v236, 0
    %v280 = vsel %vm31, %v237, 0
    %v283 = vsel %vm31, %v238, 0
    %v286 = vsel %vm31, %v239, 0
    %v289 = vsel %vm31, %v240, 0
    %291 = vmatprep.subr.mxu0 0.0
    %292 = vmatpush1.msra.mxu0 %v241
    %293 = vmatprep.subr.mxu0 0.0
    %294 = vmatpush1.msra.mxu0 %v242
    %295 = vmatprep.subr.mxu0 0.0
    %296 = vmatpush1.msra.mxu0 0.0
    %297 = vmatprep.subr.mxu0 0.0
    %298 = vmatpush1.msra.mxu0 0.0
    %299 = vmatprep.subr.mxu0 0.0
    %300 = vmatpush1.msra.mxu0 0.0
    %301 = vmatprep.subr.mxu0 0.0
    %302 = vmatpush1.msra.mxu0 0.0
    %303 = vmatprep.subr.mxu0 0.0
    %304 = vmatpush1.msra.mxu0 0.0
    %305 = vmatprep.subr.mxu0 0.0
    %306 = vmatpush1.msra.mxu0 0.0
    %307 = vmatprep.subr.mxu0 0.0
    %308 = vmatpush1.msra.mxu0 0.0
    %309 = vmatprep.subr.mxu0 0.0
    %310 = vmatpush1.msra.mxu0 0.0
    %311 = vmatprep.subr.mxu0 0.0
    %312 = vmatpush1.msra.mxu0 0.0
    %313 = vmatprep.subr.mxu0 0.0
    %314 = vmatpush1.msra.mxu0 0.0
    %315 = vmatprep.subr.mxu0 0.0
    %316 = vmatpush1.msra.mxu0 0.0
    %317 = vmatprep.subr.mxu0 0.0
    %318 = vmatpush1.msra.mxu0 0.0
    %319 = vmatprep.subr.mxu0 0.0
    %320 = vmatpush1.msra.mxu0 0.0
    %321 = vmatprep.subr.mxu0 0.0
    %322 = vmatpush1.msra.mxu0 0.0
    %323 = vmatprep.subr.mxu0 0.0
    %324 = vmatpush1.msra.mxu0 0.0
    %325 = vmatprep.subr.mxu0 0.0
    %326 = vmatpush1.msra.mxu0 0.0
    %327 = vmatprep.subr.mxu0 0.0
    %328 = vmatpush1.msra.mxu0 0.0
    %329 = vmatprep.subr.mxu0 0.0
    %330 = vmatpush1.msra.mxu0 0.0
    %331 = vmatprep.subr.mxu0 0.0
    %332 = vmatpush1.msra.mxu0 0.0
    %333 = vmatprep.subr.mxu0 0.0
    %334 = vmatpush1.msra.mxu0 0.0
    %335 = vmatprep.subr.mxu0 0.0
    %336 = vmatpush1.msra.mxu0 0.0
    %337 = vmatprep.subr.mxu0 0.0
    %338 = vmatpush1.msra.mxu0 0.0
    %339 = vmatprep.subr.mxu0 0.0
    %340 = vmatpush1.msra.mxu0 0.0
    %341 = vmatprep.subr.mxu0 0.0
    %342 = vmatpush1.msra.mxu0 0.0
    %343 = vmatprep.subr.mxu0 0.0
    %344 = vmatpush1.msra.mxu0 0.0
    %345 = vmatprep.subr.mxu0 0.0
    %346 = vmatpush1.msra.mxu0 0.0
    %347 = vmatprep.subr.mxu0 0.0
    %348 = vmatpush1.msra.mxu0 0.0
    %349 = vmatprep.subr.mxu0 0.0
    %350 = vmatpush1.msra.mxu0 0.0
    %351 = vmatprep.subr.mxu0 0.0
    %352 = vmatpush1.msra.mxu0 0.0
    %353 = vmatprep.subr.mxu0 0.0
    %354 = vmatpush1.msra.mxu0 0.0
    %355 = vmatprep.mubr.f32.mxu0 0.0
    %356 = vmatmul.mubr.f32.gmra.mrb[0].mxu0 %v244
    %v357 = vpop.f32.mrb[0].mxu0
    %v358 = vadd.f32 0.0, %v357
    %v359 = vpop.f32.mrb[0].mxu0
    %360 = vmatprep.mubr.f32.mxu0 0.0
    %361 = vmatmul.mubr.f32.gmra.mrb[0].mxu0 %v247
    %v362 = vpop.f32.mrb[0].mxu0
    %v363 = vadd.f32 0.0, %v362
    %v364 = vpop.f32.mrb[0].mxu0
    %365 = vmatprep.mubr.f32.mxu0 0.0
    %366 = vmatmul.mubr.f32.gmra.mrb[0].mxu0 %v250
    %v367 = vpop.f32.mrb[0].mxu0
    %v368 = vadd.f32 0.0, %v367
    %v369 = vpop.f32.mrb[0].mxu0
    %370 = vmatprep.mubr.f32.mxu0 0.0
    %371 = vmatmul.mubr.f32.gmra.mrb[0].mxu0 %v253
    %v372 = vpop.f32.mrb[0].mxu0
    %v373 = vadd.f32 0.0, %v372
    %v374 = vpop.f32.mrb[0].mxu0
    %375 = vmatprep.mubr.f32.mxu0 0.0
    %376 = vmatmul.mubr.f32.gmra.mrb[0].mxu0 %v256
    %v377 = vpop.f32.mrb[0].mxu0
    %v378 = vadd.f32 0.0, %v377
    %v379 = vpop.f32.mrb[0].mxu0
    %380 = vmatprep.mubr.f32.mxu0 0.0
    %381 = vmatmul.mubr.f32.gmra.mrb[0].mxu0 %v259
    %v382 = vpop.f32.mrb[0].mxu0
    %v383 = vadd.f32 0.0, %v382
    %v384 = vpop.f32.mrb[0].mxu0
    %385 = vmatprep.mubr.f32.mxu0 0.0
    %386 = vmatmul.mubr.f32.gmra.mrb[0].mxu0 %v262
    %v387 = vpop.f32.mrb[0].mxu0
    %v388 = vadd.f32 0.0, %v387
    %v389 = vpop.f32.mrb[0].mxu0
    %390 = vmatprep.mubr.f32.mxu0 0.0
    %391 = vmatmul.mubr.f32.gmra.mrb[0].mxu0 %v265
    %v392 = vpop.f32.mrb[0].mxu0
    %v393 = vadd.f32 0.0, %v392
    %v394 = vpop.f32.mrb[0].mxu0
    %395 = vmatprep.mubr.f32.mxu0 0.0
    %396 = vmatmul.mubr.f32.gmra.mrb[0].mxu0 %v268
    %v397 = vpop.f32.mrb[0].mxu0
    %v398 = vadd.f32 0.0, %v397
    %v399 = vpop.f32.mrb[0].mxu0
    %400 = vmatprep.mubr.f32.mxu0 0.0
    %401 = vmatmul.mubr.f32.gmra.mrb[0].mxu0 %v271
    %v402 = vpop.f32.mrb[0].mxu0
    %v403 = vadd.f32 0.0, %v402
    %v404 = vpop.f32.mrb[0].mxu0
    %405 = vmatprep.mubr.f32.mxu0 0.0
    %406 = vmatmul.mubr.f32.gmra.mrb[0].mxu0 %v274
    %v407 = vpop.f32.mrb[0].mxu0
    %v408 = vadd.f32 0.0, %v407
    %v409 = vpop.f32.mrb[0].mxu0
    %410 = vmatprep.mubr.f32.mxu0 0.0
    %411 = vmatmul.mubr.f32.gmra.mrb[0].mxu0 %v277
    %v412 = vpop.f32.mrb[0].mxu0
    %v413 = vadd.f32 0.0, %v412
    %v414 = vpop.f32.mrb[0].mxu0
    %415 = vmatprep.mubr.f32.mxu0 0.0
    %416 = vmatmul.mubr.f32.gmra.mrb[0].mxu0 %v280
    %v417 = vpop.f32.mrb[0].mxu0
    %v418 = vadd.f32 0.0, %v417
    %v419 = vpop.f32.mrb[0].mxu0
    %420 = vmatprep.mubr.f32.mxu0 0.0
    %421 = vmatmul.mubr.f32.gmra.mrb[0].mxu0 %v283
    %v422 = vpop.f32.mrb[0].mxu0
    %v423 = vadd.f32 0.0, %v422
    %v424 = vpop.f32.mrb[0].mxu0
    %425 = vmatprep.mubr.f32.mxu0 0.0
    %426 = vmatmul.mubr.f32.gmra.mrb[0].mxu0 %v286
    %v427 = vpop.f32.mrb[0].mxu0
    %v428 = vadd.f32 0.0, %v427
    %v429 = vpop.f32.mrb[0].mxu0
    %430 = vmatprep.mubr.f32.mxu0 0.0
    %431 = vmatmul.mubr.f32.gmra.mrb[0].mxu0 %v289
    %v432 = vpop.f32.mrb[0].mxu0
    %v433 = vadd.f32 0.0, %v432
    %v434 = vpop.f32.mrb[0].mxu0
    %435 = vdwg.mxu0
    %436 = vadd.xlane.f32.xlu0 %v358
    %v437 = vpop.xlane.xlu0 %436
    %438 = vadd.xlane.f32.xlu0 %v363
    %v439 = vpop.xlane.xlu0 %438
    %440 = vadd.xlane.f32.xlu0 %v368
    %v441 = vpop.xlane.xlu0 %440
    %442 = vadd.xlane.f32.xlu0 %v373
    %v443 = vpop.xlane.xlu0 %442
    %444 = vadd.xlane.f32.xlu0 %v378
    %v445 = vpop.xlane.xlu0 %444
    %446 = vadd.xlane.f32.xlu0 %v383
    %v447 = vpop.xlane.xlu0 %446
    %448 = vadd.xlane.f32.xlu0 %v388
    %v449 = vpop.xlane.xlu0 %448
    %450 = vadd.xlane.f32.xlu0 %v393
    %v451 = vpop.xlane.xlu0 %450
    %452 = vadd.xlane.f32.xlu0 %v398
    %v453 = vpop.xlane.xlu0 %452
    %454 = vadd.xlane.f32.xlu0 %v403
    %v455 = vpop.xlane.xlu0 %454
    %456 = vadd.xlane.f32.xlu0 %v408
    %v457 = vpop.xlane.xlu0 %456
    %458 = vadd.xlane.f32.xlu0 %v413
    %v459 = vpop.xlane.xlu0 %458
    %460 = vadd.xlane.f32.xlu0 %v418
    %v461 = vpop.xlane.xlu0 %460
    %462 = vadd.xlane.f32.xlu0 %v423
    %v463 = vpop.xlane.xlu0 %462
    %464 = vadd.xlane.f32.xlu0 %v428
    %v465 = vpop.xlane.xlu0 %464
    %466 = vadd.xlane.f32.xlu0 %v433
    %v467 = vpop.xlane.xlu0 %466
    %v468 = vmul.f32 %v437, 0.03125
    %v469 = vmul.f32 %v439, 0.03125
    %v470 = vmul.f32 %v441, 0.03125
    %v471 = vmul.f32 %v443, 0.03125
    %v472 = vmul.f32 %v445, 0.03125
    %v473 = vmul.f32 %v447, 0.03125
    %v474 = vmul.f32 %v449, 0.03125
    %v475 = vmul.f32 %v451, 0.03125
    %v476 = vmul.f32 %v453, 0.03125
    %v477 = vmul.f32 %v455, 0.03125
    %v478 = vmul.f32 %v457, 0.03125
    %v479 = vmul.f32 %v459, 0.03125
    %v480 = vmul.f32 %v461, 0.03125
    %v481 = vmul.f32 %v463, 0.03125
    %v482 = vmul.f32 %v465, 0.03125
    %v483 = vmul.f32 %v467, 0.03125
    %v484 = vsub.f32 %v358, %v468
    %v485 = vsub.f32 %v363, %v469
    %v486 = vsub.f32 %v368, %v470
    %v487 = vsub.f32 %v373, %v471
    %v488 = vsub.f32 %v378, %v472
    %v489 = vsub.f32 %v383, %v473
    %v490 = vsub.f32 %v388, %v474
    %v491 = vsub.f32 %v393, %v475
    %v492 = vsub.f32 %v398, %v476
    %v493 = vsub.f32 %v403, %v477
    %v494 = vsub.f32 %v408, %v478
    %v495 = vsub.f32 %v413, %v479
    %v496 = vsub.f32 %v418, %v480
    %v497 = vsub.f32 %v423, %v481
    %v498 = vsub.f32 %v428, %v482
    %v499 = vsub.f32 %v433, %v483
    %v500 = vlaneseq
    %v501 = vand.u32 %v500, 127
    %vm502 = vcmp.lt.s32.totalorder %v501, 32
    %v503 = vsel %vm502, 1, 0
    %vm504 = vcmp.eq.s32.totalorder %v503, 1
    %v505 = vsel %vm504, %v484, 0.0
    %v506 = vsel %vm504, %v485, 0.0
    %v507 = vsel %vm504, %v486, 0.0
    %v508 = vsel %vm504, %v487, 0.0
    %v509 = vsel %vm504, %v488, 0.0
    %v510 = vsel %vm504, %v489, 0.0
    %v511 = vsel %vm504, %v490, 0.0
    %v512 = vsel %vm504, %v491, 0.0
    %v513 = vsel %vm504, %v492, 0.0
    %v514 = vsel %vm504, %v493, 0.0
    %v515 = vsel %vm504, %v494, 0.0
    %v516 = vsel %vm504, %v495, 0.0
    %v517 = vsel %vm504, %v496, 0.0
    %v518 = vsel %vm504, %v497, 0.0
    %v519 = vsel %vm504, %v498, 0.0
    %v520 = vsel %vm504, %v499, 0.0
    %v521 = vmul.f32 %v505, %v505
    %v522 = vmul.f32 %v506, %v506
    %v523 = vmul.f32 %v507, %v507
    %v524 = vmul.f32 %v508, %v508
    %v525 = vmul.f32 %v509, %v509
    %v526 = vmul.f32 %v510, %v510
    %v527 = vmul.f32 %v511, %v511
    %v528 = vmul.f32 %v512, %v512
    %v529 = vmul.f32 %v513, %v513
    %v530 = vmul.f32 %v514, %v514
    %v531 = vmul.f32 %v515, %v515
    %v532 = vmul.f32 %v516, %v516
    %v533 = vmul.f32 %v517, %v517
    %v534 = vmul.f32 %v518, %v518
    %v535 = vmul.f32 %v519, %v519
    %v536 = vmul.f32 %v520, %v520
    %537 = vadd.xlane.f32.xlu0 %v521
    %v538 = vpop.xlane.xlu0 %537
    %539 = vadd.xlane.f32.xlu0 %v522
    %v540 = vpop.xlane.xlu0 %539
    %541 = vadd.xlane.f32.xlu0 %v523
    %v542 = vpop.xlane.xlu0 %541
    %543 = vadd.xlane.f32.xlu0 %v524
    %v544 = vpop.xlane.xlu0 %543
    %545 = vadd.xlane.f32.xlu0 %v525
    %v546 = vpop.xlane.xlu0 %545
    %547 = vadd.xlane.f32.xlu0 %v526
    %v548 = vpop.xlane.xlu0 %547
    %549 = vadd.xlane.f32.xlu0 %v527
    %v550 = vpop.xlane.xlu0 %549
    %551 = vadd.xlane.f32.xlu0 %v528
    %v552 = vpop.xlane.xlu0 %551
    %553 = vadd.xlane.f32.xlu0 %v529
    %v554 = vpop.xlane.xlu0 %553
    %555 = vadd.xlane.f32.xlu0 %v530
    %v556 = vpop.xlane.xlu0 %555
    %557 = vadd.xlane.f32.xlu0 %v531
    %v558 = vpop.xlane.xlu0 %557
    %559 = vadd.xlane.f32.xlu0 %v532
    %v560 = vpop.xlane.xlu0 %559
    %561 = vadd.xlane.f32.xlu0 %v533
    %v562 = vpop.xlane.xlu0 %561
    %563 = vadd.xlane.f32.xlu0 %v534
    %v564 = vpop.xlane.xlu0 %563
    %565 = vadd.xlane.f32.xlu0 %v535
    %v566 = vpop.xlane.xlu0 %565
    %567 = vadd.xlane.f32.xlu0 %v536
    %v568 = vpop.xlane.xlu0 %567
    %v569 = vmul.f32 %v538, 0.03125
    %v570 = vmul.f32 %v540, 0.03125
    %v571 = vmul.f32 %v542, 0.03125
    %v572 = vmul.f32 %v544, 0.03125
    %v573 = vmul.f32 %v546, 0.03125
    %v574 = vmul.f32 %v548, 0.03125
    %v575 = vmul.f32 %v550, 0.03125
    %v576 = vmul.f32 %v552, 0.03125
    %v577 = vmul.f32 %v554, 0.03125
    %v578 = vmul.f32 %v556, 0.03125
    %v579 = vmul.f32 %v558, 0.03125
    %v580 = vmul.f32 %v560, 0.03125
    %v581 = vmul.f32 %v562, 0.03125
    %v582 = vmul.f32 %v564, 0.03125
    %v583 = vmul.f32 %v566, 0.03125
    %v584 = vmul.f32 %v568, 0.03125
    %v585 = vadd.f32 %v569, 1e-06
    %v586 = vadd.f32 %v570, 1e-06
    %v587 = vadd.f32 %v571, 1e-06
    %v588 = vadd.f32 %v572, 1e-06
    %v589 = vadd.f32 %v573, 1e-06
    %v590 = vadd.f32 %v574, 1e-06
    %v591 = vadd.f32 %v575, 1e-06
    %v592 = vadd.f32 %v576, 1e-06
    %v593 = vadd.f32 %v577, 1e-06
    %v594 = vadd.f32 %v578, 1e-06
    %v595 = vadd.f32 %v579, 1e-06
    %v596 = vadd.f32 %v580, 1e-06
    %v597 = vadd.f32 %v581, 1e-06
    %v598 = vadd.f32 %v582, 1e-06
    %v599 = vadd.f32 %v583, 1e-06
    %v600 = vadd.f32 %v584, 1e-06
    %v601 = vrsqrt.pop %v585
    %v602 = vrsqrt.pop %v586
    %v603 = vrsqrt.pop %v587
    %v604 = vrsqrt.pop %v588
    %v605 = vrsqrt.pop %v589
    %v606 = vrsqrt.pop %v590
    %v607 = vrsqrt.pop %v591
    %v608 = vrsqrt.pop %v592
    %v609 = vrsqrt.pop %v593
    %v610 = vrsqrt.pop %v594
    %v611 = vrsqrt.pop %v595
    %v612 = vrsqrt.pop %v596
    %v613 = vrsqrt.pop %v597
    %v614 = vrsqrt.pop %v598
    %v615 = vrsqrt.pop %v599
    %v616 = vrsqrt.pop %v600
    %v617 = vmul.f32 %v484, %v601
    %v618 = vmul.f32 %v485, %v602
    %v619 = vmul.f32 %v486, %v603
    %v620 = vmul.f32 %v487, %v604
    %v621 = vmul.f32 %v488, %v605
    %v622 = vmul.f32 %v489, %v606
    %v623 = vmul.f32 %v490, %v607
    %v624 = vmul.f32 %v491, %v608
    %v625 = vmul.f32 %v492, %v609
    %v626 = vmul.f32 %v493, %v610
    %v627 = vmul.f32 %v494, %v611
    %v628 = vmul.f32 %v495, %v612
    %v629 = vmul.f32 %v496, %v613
    %v630 = vmul.f32 %v497, %v614
    %v631 = vmul.f32 %v498, %v615
    %v632 = vmul.f32 %v499, %v616
    %v633 = vld [vmem:[%s2] sm:$0x1]
    %v635 = vlaneseq
    %v636 = vshrl.u32 %v635, 7
    %v637 = vsub.s32 0, %v636
    %v638 = vrot.slane %v633, %v637
    %v640 = vmul.f32 %v617, %v638
    %v641 = vmul.f32 %v618, %v638
    %v642 = vmul.f32 %v619, %v638
    %v643 = vmul.f32 %v620, %v638
    %v644 = vmul.f32 %v621, %v638
    %v645 = vmul.f32 %v622, %v638
    %v646 = vmul.f32 %v623, %v638
    %v647 = vmul.f32 %v624, %v638
    %v648 = vmul.f32 %v625, %v638
    %v649 = vmul.f32 %v626, %v638
    %v650 = vmul.f32 %v627, %v638
    %v651 = vmul.f32 %v628, %v638
    %v652 = vmul.f32 %v629, %v638
    %v653 = vmul.f32 %v630, %v638
    %v654 = vmul.f32 %v631, %v638
    %v655 = vmul.f32 %v632, %v638
    %656 = vst [vmem:[#allocation2] sm:$0xff] %v640
    %657 = vst [vmem:[#allocation2 + $0x8] sm:$0xff] %v641
    %658 = vst [vmem:[#allocation2 + $0x10] sm:$0xff] %v642
    %659 = vst [vmem:[#allocation2 + $0x18] sm:$0xff] %v643
    %660 = vst [vmem:[#allocation2 + $0x20] sm:$0xff] %v644
    %661 = vst [vmem:[#allocation2 + $0x28] sm:$0xff] %v645
    %662 = vst [vmem:[#allocation2 + $0x30] sm:$0xff] %v646
    %663 = vst [vmem:[#allocation2 + $0x38] sm:$0xff] %v647
    %664 = vst [vmem:[#allocation2 + $0x40] sm:$0xff] %v648
    %665 = vst [vmem:[#allocation2 + $0x48] sm:$0xff] %v649
    %666 = vst [vmem:[#allocation2 + $0x50] sm:$0xff] %v650
    %667 = vst [vmem:[#allocation2 + $0x58] sm:$0xff] %v651
    %668 = vst [vmem:[#allocation2 + $0x60] sm:$0xff] %v652
    %669 = vst [vmem:[#allocation2 + $0x68] sm:$0xff] %v653
    %670 = vst [vmem:[#allocation2 + $0x70] sm:$0xff] %v654
    %671 = vst [vmem:[#allocation2 + $0x78] sm:$0xff] %v655
    // Predicated region
    $region14: #{tpu_custom_call.1} parent=1 // pred_check
      _
    $region15: #{tpu_custom_call.1} parent=1 // pred_check_branch
      %673 = sbr.rel (0) target = $region17
    $region16: #{tpu_custom_call.1} parent=1 // pred_region
      %s675 = ssub.s32 2048, 2048
      %676 = vsyncadd [#allocation3], %s675
      %s677 = sshll.u32 [#allocation2], 4
      %s678 = int_to_ptr.vmem [resolvable:$true] %s677
      %683 = dma.vmem_to_hbm [thread:$0]  %s678, 2048, %s3, [#allocation3], 128, 128, 8
    $region17: #{tpu_custom_call.1} parent=1 // pred_fallthru
      _
    // Predicated region
    $region18: #{tpu_custom_call.1} parent=1 // pred_check
      _
    $region19: #{tpu_custom_call.1} parent=1 // pred_check_branch
      %685 = sbr.rel (0) target = $region21
    $region20: #{tpu_custom_call.1} parent=1 // pred_region
      %686 = dma.done [#allocation3], 2048
    $region21: #{tpu_custom_call.1} parent=1 // pred_fallthru
      _
    %687 = vsyncpa [#allocation3], 1

</llo_original>
